<compile_context>
chip_gen: v5e
topology: v5e:2x2
jax: 0.10.0
libtpu: 0.0.40
codegen_flags: <defaults>
</compile_context>

<pallas_src>
import functools

import jax
import jax.numpy as jnp
from jax.experimental import pallas as pl
from jax.experimental.pallas import tpu as pltpu
from jax.scipy.linalg import block_diag


# ----------------------------------------------------------------------------
# Fused forward kernel
# ----------------------------------------------------------------------------
def md_fused_kernel(x2d_ref, wih_ref, whh_ref, b_ref,
                    wfc_ref, bfc_ref, w1_ref, b1_ref,
                    w2_ref, b2_ref, wy_ref, by_ref,
                    y_ref, xg_ref, *, t, n, h_tot):
    # (1) Hoist the input->gate projection of ALL timesteps out of the serial
    #     recurrence: one (T*N, D) @ (D, 4*H_tot) MXU matmul, bias added once.
    xg_ref[...] = (jnp.dot(x2d_ref[...], wih_ref[...],
                           preferred_element_type=jnp.float32) + b_ref[...])

    whh = whh_ref[...]
    h = jnp.zeros((n, h_tot), jnp.float32)
    c = jnp.zeros((n, h_tot), jnp.float32)

    # (2) Fully unrolled recurrence over time (T is a small static constant):
    #     no per-step grid/pipeline overhead; only the h-dependent matmul stays
    #     on the serial chain.
    for i in range(t):
        gates = xg_ref[i * n:(i + 1) * n, :] + jnp.dot(
            h, whh, preferred_element_type=jnp.float32)
        # One full-width sigmoid covers all 4 gate groups; the 'g' (cell
        # candidate) columns were pre-scaled by 2 so tanh(x) = 2*sigmoid(2x)-1.
        s = jax.nn.sigmoid(gates)
        i_g = s[:, 0 * h_tot:1 * h_tot]
        f_g = s[:, 1 * h_tot:2 * h_tot]
        g_g = 2.0 * s[:, 2 * h_tot:3 * h_tot] - 1.0
        o_g = s[:, 3 * h_tot:4 * h_tot]
        c = f_g * c + i_g * g_g
        h = o_g * jnp.tanh(c)

    # (3) encoder fc1 + z->f MLPs + fs_to_y, all block-diagonal fused so the
    #     fl/fa/fv concat is implicit in the column layout.
    z = jnp.dot(h, wfc_ref[...], preferred_element_type=jnp.float32) + bfc_ref[...]
    # TODO(synk): dropout layers are treated as identity (eval-mode semantics).
    h1 = jnp.maximum(
        jnp.dot(z, w1_ref[...], preferred_element_type=jnp.float32)
        + b1_ref[...], 0.0)
    fs = jnp.maximum(
        jnp.dot(h1, w2_ref[...], preferred_element_type=jnp.float32)
        + b2_ref[...], 0.0)
    y_ref[...] = (jnp.dot(fs, wy_ref[...], preferred_element_type=jnp.float32)
                  + by_ref[...])


# ----------------------------------------------------------------------------
# Parameter fusion: pack 3 independent modality paths into block-diagonal
# weights (one-time transform, plain JAX).
# ----------------------------------------------------------------------------
def fuse_params(params):
    mods = ('l', 'a', 'v')
    enc = [params['enc_' + m] for m in mods]
    mlp = [params['mlp_' + m] for m in mods]
    hs = [e['whh_t'].shape[0] for e in enc]
    h_tot = sum(hs)

    def gate_cols(mat, g, h):
        return mat[:, g * h:(g + 1) * h]

    # LSTM weights, gate-grouped columns [i | f | g | o] (each H_tot wide),
    # block-diagonal over modalities inside each gate group.
    wih = jnp.concatenate(
        [block_diag(*[gate_cols(e['wih_t'], g, h) for e, h in zip(enc, hs)])
         for g in range(4)], axis=1)
    whh = jnp.concatenate(
        [block_diag(*[gate_cols(e['whh_t'], g, h) for e, h in zip(enc, hs)])
         for g in range(4)], axis=1)
    b = jnp.concatenate(
        [jnp.concatenate([(e['b_ih'] + e['b_hh'])[g * h:(g + 1) * h]
                          for e, h in zip(enc, hs)])
         for g in range(4)])[None, :]

    # Pre-scale the cell-candidate gate so one full-width sigmoid suffices in
    # the kernel: tanh(x) = 2*sigmoid(2x) - 1.
    scale = jnp.concatenate([jnp.ones((2 * h_tot,), jnp.float32),
                             2.0 * jnp.ones((h_tot,), jnp.float32),
                             jnp.ones((h_tot,), jnp.float32)])
    wih = wih * scale[None, :]
    whh = whh * scale[None, :]
    b = b * scale[None, :]

    wfc = block_diag(*[e['wfc_t'] for e in enc])
    bfc = jnp.concatenate([e['bfc'] for e in enc])[None, :]
    w1 = block_diag(*[p['w1_t'] for p in mlp])
    b1 = jnp.concatenate([p['b1'] for p in mlp])[None, :]
    w2 = block_diag(*[p['w2_t'] for p in mlp])
    b2 = jnp.concatenate([p['b2'] for p in mlp])[None, :]
    wy = params['fs_to_y']['w_t']
    by = params['fs_to_y']['b'][None, :]
    return dict(wih=wih, whh=whh, b=b, wfc=wfc, bfc=bfc,
                w1=w1, b1=b1, w2=w2, b2=b2, wy=wy, by=by)


# ----------------------------------------------------------------------------
# M_D forward (single pallas_call)
# ----------------------------------------------------------------------------
@functools.partial(jax.jit, static_argnames=('d_l', 'd_a', 'd_v'))
def md_forward(x, fused, *, d_l, d_a, d_v):
    t, n, d = x.shape
    h_tot = fused['whh'].shape[0]
    out_dim = fused['wy'].shape[1]

    x_l = x[:, :, :d_l]
    x_a = x[:, :, d_l:d_l + d_a]
    x_v = x[:, :, d_l + d_a:]

    kernel = functools.partial(md_fused_kernel, t=t, n=n, h_tot=h_tot)
    y_hat = pl.pallas_call(
        kernel,
        out_shape=jax.ShapeDtypeStruct((n, out_dim), jnp.float32),
        scratch_shapes=[pltpu.VMEM((t * n, 4 * h_tot), jnp.float32)],
    )(x.reshape(t * n, d),
      fused['wih'], fused['whh'], fused['b'],
      fused['wfc'], fused['bfc'], fused['w1'], fused['b1'],
      fused['w2'], fused['b2'], fused['wy'], fused['by'])

    decoded = [x_l, x_a, x_v, y_hat]
    mmd_loss = jnp.float32(0.0)
    missing_loss = jnp.float32(0.0)
    return decoded, mmd_loss, missing_loss


# ----------------------------------------------------------------------------
# Parameter init (deterministic, synthetic; nn.LSTMCell gate order i,f,g,o,
# with separate bias_ih / bias_hh like PyTorch)
# ----------------------------------------------------------------------------
def init_encoder_params(key, d, h):
    ks = jax.random.split(key, 6)
    s = 0.1
    return {'wih_t': s * jax.random.normal(ks[0], (d, 4 * h), jnp.float32),
            'whh_t': s * jax.random.normal(ks[1], (h, 4 * h), jnp.float32),
            'b_ih': s * jax.random.normal(ks[2], (4 * h,), jnp.float32),
            'b_hh': s * jax.random.normal(ks[3], (4 * h,), jnp.float32),
            'wfc_t': s * jax.random.normal(ks[4], (h, h), jnp.float32),
            'bfc': s * jax.random.normal(ks[5], (h,), jnp.float32)}


def init_mlp_params(key, zin, f):
    ks = jax.random.split(key, 4)
    s = 0.1
    return {'w1_t': s * jax.random.normal(ks[0], (zin, f), jnp.float32),
            'b1': s * jax.random.normal(ks[1], (f,), jnp.float32),
            'w2_t': s * jax.random.normal(ks[2], (f, f), jnp.float32),
            'b2': s * jax.random.normal(ks[3], (f,), jnp.float32)}


def init_linear_params(key, din, dout):
    ks = jax.random.split(key, 2)
    s = 0.1
    return {'w_t': s * jax.random.normal(ks[0], (din, dout), jnp.float32),
            'b': s * jax.random.normal(ks[1], (dout,), jnp.float32)}


# ----------------------------------------------------------------------------
# Pure-JAX reference (mirrors the PyTorch M_D forward, eval-mode dropout)
# ----------------------------------------------------------------------------
def reference_forward(x, params, cfg):
    d_l, d_a, d_v = cfg['input_dims']
    splits = [x[:, :, :d_l], x[:, :, d_l:d_l + d_a], x[:, :, d_l + d_a:]]
    fs_parts = []
    for xm, m in zip(splits, ('l', 'a', 'v')):
        e = params['enc_' + m]
        hid = e['whh_t'].shape[0]
        t, n, _ = xm.shape
        h = jnp.zeros((n, hid), jnp.float32)
        c = jnp.zeros((n, hid), jnp.float32)
        for i in range(t):
            gates = xm[i] @ e['wih_t'] + h @ e['whh_t'] + e['b_ih'] + e['b_hh']
            i_g = jax.nn.sigmoid(gates[:, :hid])
            f_g = jax.nn.sigmoid(gates[:, hid:2 * hid])
            g_g = jnp.tanh(gates[:, 2 * hid:3 * hid])
            o_g = jax.nn.sigmoid(gates[:, 3 * hid:])
            c = f_g * c + i_g * g_g
            h = o_g * jnp.tanh(c)
        z = h @ e['wfc_t'] + e['bfc']
        p = params['mlp_' + m]
        f = jnp.maximum(jnp.maximum(z @ p['w1_t'] + p['b1'], 0.0)
                        @ p['w2_t'] + p['b2'], 0.0)
        fs_parts.append(f)
    fs = jnp.concatenate(fs_parts, axis=1)
    return fs @ params['fs_to_y']['w_t'] + params['fs_to_y']['b']


# ----------------------------------------------------------------------------
# Main
# ----------------------------------------------------------------------------
if __name__ == "__main__":
    cfg = {
        'input_dims': [8, 4, 4],            # d_l, d_a, d_v
        'zl_size': 8, 'za_size': 8, 'zv_size': 8,
        'fl_size': 8, 'fa_size': 8, 'fv_size': 8,
        'output_dim': 1,
    }
    d_l, d_a, d_v = cfg['input_dims']
    D = d_l + d_a + d_v
    T, N = 8, 2

    key = jax.random.PRNGKey(0)
    keys = jax.random.split(key, 8)
    params = {
        'enc_l': init_encoder_params(keys[0], d_l, cfg['zl_size']),
        'enc_a': init_encoder_params(keys[1], d_a, cfg['za_size']),
        'enc_v': init_encoder_params(keys[2], d_v, cfg['zv_size']),
        'mlp_l': init_mlp_params(keys[3], cfg['zl_size'], cfg['fl_size']),
        'mlp_a': init_mlp_params(keys[4], cfg['za_size'], cfg['fa_size']),
        'mlp_v': init_mlp_params(keys[5], cfg['zv_size'], cfg['fv_size']),
        'fs_to_y': init_linear_params(
            keys[6], cfg['fl_size'] + cfg['fa_size'] + cfg['fv_size'],
            cfg['output_dim']),
    }
    x = jax.random.normal(keys[7], (T, N, D), jnp.float32)

    fused = fuse_params(params)   # one-time block-diagonal weight packing

    decoded, mmd_loss, missing_loss = md_forward(
        x, fused, d_l=d_l, d_a=d_a, d_v=d_v)
    jax.block_until_ready(decoded)
    jax.block_until_ready(mmd_loss)

    # Shape checks (decoded = [x_l, x_a, x_v, y_hat] as in the PyTorch module).
    assert decoded[0].shape == (T, N, d_l)
    assert decoded[1].shape == (T, N, d_a)
    assert decoded[2].shape == (T, N, d_v)
    assert decoded[3].shape == (N, cfg['output_dim'])
    assert mmd_loss.shape == () and missing_loss.shape == ()

    # Numerical smoke check against a pure-JAX reference of the same forward.
    y_ref = reference_forward(x, params, cfg)
    assert float(jnp.max(jnp.abs(decoded[3] - y_ref))) < 5e-2

    print("KERNEL_OK")
</pallas_src>

<mosaic_0001>
module attributes {stable_mosaic.version = 11 : i64} {
  func.func @md_fused_kernel(%arg0: memref<16x16xf32, #tpu.memory_space<vmem>>, %arg1: memref<16x96xf32, #tpu.memory_space<vmem>>, %arg2: memref<24x96xf32, #tpu.memory_space<vmem>>, %arg3: memref<1x96xf32, #tpu.memory_space<vmem>>, %arg4: memref<24x24xf32, #tpu.memory_space<vmem>>, %arg5: memref<1x24xf32, #tpu.memory_space<vmem>>, %arg6: memref<24x24xf32, #tpu.memory_space<vmem>>, %arg7: memref<1x24xf32, #tpu.memory_space<vmem>>, %arg8: memref<24x24xf32, #tpu.memory_space<vmem>>, %arg9: memref<1x24xf32, #tpu.memory_space<vmem>>, %arg10: memref<24x1xf32, #tpu.memory_space<vmem>>, %arg11: memref<1x1xf32, #tpu.memory_space<vmem>>, %arg12: memref<2x1xf32, #tpu.memory_space<vmem>>, %arg13: memref<16x96xf32, #tpu.memory_space<vmem>>) attributes {dimension_semantics = [], scalar_prefetch = 0 : i64, scratch_operands = 1 : i64, tpu.core_type = #tpu.core_type<tc>} {
    %c0 = arith.constant 0 : index
    %c0_0 = arith.constant 0 : index
    %0 = vector.load %arg0[%c0, %c0_0] : memref<16x16xf32, #tpu.memory_space<vmem>>, vector<16x16xf32>
    %c0_1 = arith.constant 0 : index
    %c0_2 = arith.constant 0 : index
    %1 = vector.load %arg1[%c0_1, %c0_2] : memref<16x96xf32, #tpu.memory_space<vmem>>, vector<16x96xf32>
    %cst = arith.constant dense<0.000000e+00> : vector<16x96xf32>
    %2 = tpu.matmul %0, %1, %cst {dimension_numbers = #tpu.dot_dimension_numbers<[1], [0], [0], [1], [0, 0, 1, 1], [], []>} : vector<16x16xf32>, vector<16x96xf32>, vector<16x96xf32> -> vector<16x96xf32>
    %c0_3 = arith.constant 0 : index
    %c0_4 = arith.constant 0 : index
    %3 = vector.load %arg3[%c0_3, %c0_4] : memref<1x96xf32, #tpu.memory_space<vmem>>, vector<1x96xf32>
    %4 = vector.broadcast %3 : vector<1x96xf32> to vector<16x96xf32>
    %5 = arith.addf %2, %4 : vector<16x96xf32>
    %c0_5 = arith.constant 0 : index
    %c0_6 = arith.constant 0 : index
    %6 = vector.load %arg13[%c0_5, %c0_6] : memref<16x96xf32, #tpu.memory_space<vmem>>, vector<16x96xf32>
    tpu.vector_store %arg13[%c0_5, %c0_6], %5 {strides = array<i32>} : memref<16x96xf32, #tpu.memory_space<vmem>>, vector<16x96xf32>,
    %c0_7 = arith.constant 0 : index
    %c0_8 = arith.constant 0 : index
    %7 = vector.load %arg2[%c0_7, %c0_8] : memref<24x96xf32, #tpu.memory_space<vmem>>, vector<24x96xf32>
    %cst_9 = arith.constant 0.000000e+00 : f32
    %8 = vector.broadcast %cst_9 : f32 to vector<2x24xf32>
    %cst_10 = arith.constant 0.000000e+00 : f32
    %9 = vector.broadcast %cst_10 : f32 to vector<2x24xf32>
    %c0_11 = arith.constant 0 : index
    %c0_12 = arith.constant 0 : index
    %10 = vector.load %arg13[%c0_11, %c0_12] : memref<16x96xf32, #tpu.memory_space<vmem>>, vector<2x96xf32>
    %cst_13 = arith.constant dense<0.000000e+00> : vector<2x96xf32>
    %11 = tpu.matmul %8, %7, %cst_13 {dimension_numbers = #tpu.dot_dimension_numbers<[1], [0], [0], [1], [0, 0, 1, 1], [], []>} : vector<2x24xf32>, vector<24x96xf32>, vector<2x96xf32> -> vector<2x96xf32>
    %12 = arith.addf %10, %11 : vector<2x96xf32>
    %13 = arith.negf %12 : vector<2x96xf32>
    %14 = math.exp %13 : vector<2x96xf32>
    %cst_14 = arith.constant 1.000000e+00 : f32
    %15 = vector.broadcast %cst_14 : f32 to vector<2x96xf32>
    %16 = arith.addf %15, %14 : vector<2x96xf32>
    %17 = arith.divf %15, %16 : vector<2x96xf32>
    %18 = vector.extract_strided_slice %17 {offsets = [0, 0], sizes = [2, 24], strides = [1, 1]} : vector<2x96xf32> to vector<2x24xf32>
    %19 = vector.extract_strided_slice %17 {offsets = [0, 24], sizes = [2, 24], strides = [1, 1]} : vector<2x96xf32> to vector<2x24xf32>
    %20 = vector.extract_strided_slice %17 {offsets = [0, 48], sizes = [2, 24], strides = [1, 1]} : vector<2x96xf32> to vector<2x24xf32>
    %cst_15 = arith.constant 2.000000e+00 : f32
    %21 = vector.broadcast %cst_15 : f32 to vector<2x24xf32>
    %22 = arith.mulf %21, %20 : vector<2x24xf32>
    %cst_16 = arith.constant 1.000000e+00 : f32
    %23 = vector.broadcast %cst_16 : f32 to vector<2x24xf32>
    %24 = arith.subf %22, %23 : vector<2x24xf32>
    %25 = vector.extract_strided_slice %17 {offsets = [0, 72], sizes = [2, 24], strides = [1, 1]} : vector<2x96xf32> to vector<2x24xf32>
    %26 = arith.mulf %19, %9 : vector<2x24xf32>
    %27 = arith.mulf %18, %24 : vector<2x24xf32>
    %28 = arith.addf %26, %27 : vector<2x24xf32>
    %29 = math.tanh %28 : vector<2x24xf32>
    %30 = arith.mulf %25, %29 : vector<2x24xf32>
    %c2 = arith.constant 2 : index
    %c0_17 = arith.constant 0 : index
    %31 = vector.load %arg13[%c2, %c0_17] : memref<16x96xf32, #tpu.memory_space<vmem>>, vector<2x96xf32>
    %cst_18 = arith.constant dense<0.000000e+00> : vector<2x96xf32>
    %32 = tpu.matmul %30, %7, %cst_18 {dimension_numbers = #tpu.dot_dimension_numbers<[1], [0], [0], [1], [0, 0, 1, 1], [], []>} : vector<2x24xf32>, vector<24x96xf32>, vector<2x96xf32> -> vector<2x96xf32>
    %33 = arith.addf %31, %32 : vector<2x96xf32>
    %34 = arith.negf %33 : vector<2x96xf32>
    %35 = math.exp %34 : vector<2x96xf32>
    %cst_19 = arith.constant 1.000000e+00 : f32
    %36 = vector.broadcast %cst_19 : f32 to vector<2x96xf32>
    %37 = arith.addf %36, %35 : vector<2x96xf32>
    %38 = arith.divf %36, %37 : vector<2x96xf32>
    %39 = vector.extract_strided_slice %38 {offsets = [0, 0], sizes = [2, 24], strides = [1, 1]} : vector<2x96xf32> to vector<2x24xf32>
    %40 = vector.extract_strided_slice %38 {offsets = [0, 24], sizes = [2, 24], strides = [1, 1]} : vector<2x96xf32> to vector<2x24xf32>
    %41 = vector.extract_strided_slice %38 {offsets = [0, 48], sizes = [2, 24], strides = [1, 1]} : vector<2x96xf32> to vector<2x24xf32>
    %cst_20 = arith.constant 2.000000e+00 : f32
    %42 = vector.broadcast %cst_20 : f32 to vector<2x24xf32>
    %43 = arith.mulf %42, %41 : vector<2x24xf32>
    %cst_21 = arith.constant 1.000000e+00 : f32
    %44 = vector.broadcast %cst_21 : f32 to vector<2x24xf32>
    %45 = arith.subf %43, %44 : vector<2x24xf32>
    %46 = vector.extract_strided_slice %38 {offsets = [0, 72], sizes = [2, 24], strides = [1, 1]} : vector<2x96xf32> to vector<2x24xf32>
    %47 = arith.mulf %40, %28 : vector<2x24xf32>
    %48 = arith.mulf %39, %45 : vector<2x24xf32>
    %49 = arith.addf %47, %48 : vector<2x24xf32>
    %50 = math.tanh %49 : vector<2x24xf32>
    %51 = arith.mulf %46, %50 : vector<2x24xf32>
    %c4 = arith.constant 4 : index
    %c0_22 = arith.constant 0 : index
    %52 = vector.load %arg13[%c4, %c0_22] : memref<16x96xf32, #tpu.memory_space<vmem>>, vector<2x96xf32>
    %cst_23 = arith.constant dense<0.000000e+00> : vector<2x96xf32>
    %53 = tpu.matmul %51, %7, %cst_23 {dimension_numbers = #tpu.dot_dimension_numbers<[1], [0], [0], [1], [0, 0, 1, 1], [], []>} : vector<2x24xf32>, vector<24x96xf32>, vector<2x96xf32> -> vector<2x96xf32>
    %54 = arith.addf %52, %53 : vector<2x96xf32>
    %55 = arith.negf %54 : vector<2x96xf32>
    %56 = math.exp %55 : vector<2x96xf32>
    %cst_24 = arith.constant 1.000000e+00 : f32
    %57 = vector.broadcast %cst_24 : f32 to vector<2x96xf32>
    %58 = arith.addf %57, %56 : vector<2x96xf32>
    %59 = arith.divf %57, %58 : vector<2x96xf32>
    %60 = vector.extract_strided_slice %59 {offsets = [0, 0], sizes = [2, 24], strides = [1, 1]} : vector<2x96xf32> to vector<2x24xf32>
    %61 = vector.extract_strided_slice %59 {offsets = [0, 24], sizes = [2, 24], strides = [1, 1]} : vector<2x96xf32> to vector<2x24xf32>
    %62 = vector.extract_strided_slice %59 {offsets = [0, 48], sizes = [2, 24], strides = [1, 1]} : vector<2x96xf32> to vector<2x24xf32>
    %cst_25 = arith.constant 2.000000e+00 : f32
    %63 = vector.broadcast %cst_25 : f32 to vector<2x24xf32>
    %64 = arith.mulf %63, %62 : vector<2x24xf32>
    %cst_26 = arith.constant 1.000000e+00 : f32
    %65 = vector.broadcast %cst_26 : f32 to vector<2x24xf32>
    %66 = arith.subf %64, %65 : vector<2x24xf32>
    %67 = vector.extract_strided_slice %59 {offsets = [0, 72], sizes = [2, 24], strides = [1, 1]} : vector<2x96xf32> to vector<2x24xf32>
    %68 = arith.mulf %61, %49 : vector<2x24xf32>
    %69 = arith.mulf %60, %66 : vector<2x24xf32>
    %70 = arith.addf %68, %69 : vector<2x24xf32>
    %71 = math.tanh %70 : vector<2x24xf32>
    %72 = arith.mulf %67, %71 : vector<2x24xf32>
    %c6 = arith.constant 6 : index
    %c0_27 = arith.constant 0 : index
    %73 = vector.load %arg13[%c6, %c0_27] : memref<16x96xf32, #tpu.memory_space<vmem>>, vector<2x96xf32>
    %cst_28 = arith.constant dense<0.000000e+00> : vector<2x96xf32>
    %74 = tpu.matmul %72, %7, %cst_28 {dimension_numbers = #tpu.dot_dimension_numbers<[1], [0], [0], [1], [0, 0, 1, 1], [], []>} : vector<2x24xf32>, vector<24x96xf32>, vector<2x96xf32> -> vector<2x96xf32>
    %75 = arith.addf %73, %74 : vector<2x96xf32>
    %76 = arith.negf %75 : vector<2x96xf32>
    %77 = math.exp %76 : vector<2x96xf32>
    %cst_29 = arith.constant 1.000000e+00 : f32
    %78 = vector.broadcast %cst_29 : f32 to vector<2x96xf32>
    %79 = arith.addf %78, %77 : vector<2x96xf32>
    %80 = arith.divf %78, %79 : vector<2x96xf32>
    %81 = vector.extract_strided_slice %80 {offsets = [0, 0], sizes = [2, 24], strides = [1, 1]} : vector<2x96xf32> to vector<2x24xf32>
    %82 = vector.extract_strided_slice %80 {offsets = [0, 24], sizes = [2, 24], strides = [1, 1]} : vector<2x96xf32> to vector<2x24xf32>
    %83 = vector.extract_strided_slice %80 {offsets = [0, 48], sizes = [2, 24], strides = [1, 1]} : vector<2x96xf32> to vector<2x24xf32>
    %cst_30 = arith.constant 2.000000e+00 : f32
    %84 = vector.broadcast %cst_30 : f32 to vector<2x24xf32>
    %85 = arith.mulf %84, %83 : vector<2x24xf32>
    %cst_31 = arith.constant 1.000000e+00 : f32
    %86 = vector.broadcast %cst_31 : f32 to vector<2x24xf32>
    %87 = arith.subf %85, %86 : vector<2x24xf32>
    %88 = vector.extract_strided_slice %80 {offsets = [0, 72], sizes = [2, 24], strides = [1, 1]} : vector<2x96xf32> to vector<2x24xf32>
    %89 = arith.mulf %82, %70 : vector<2x24xf32>
    %90 = arith.mulf %81, %87 : vector<2x24xf32>
    %91 = arith.addf %89, %90 : vector<2x24xf32>
    %92 = math.tanh %91 : vector<2x24xf32>
    %93 = arith.mulf %88, %92 : vector<2x24xf32>
    %c8 = arith.constant 8 : index
    %c0_32 = arith.constant 0 : index
    %94 = vector.load %arg13[%c8, %c0_32] : memref<16x96xf32, #tpu.memory_space<vmem>>, vector<2x96xf32>
    %cst_33 = arith.constant dense<0.000000e+00> : vector<2x96xf32>
    %95 = tpu.matmul %93, %7, %cst_33 {dimension_numbers = #tpu.dot_dimension_numbers<[1], [0], [0], [1], [0, 0, 1, 1], [], []>} : vector<2x24xf32>, vector<24x96xf32>, vector<2x96xf32> -> vector<2x96xf32>
    %96 = arith.addf %94, %95 : vector<2x96xf32>
    %97 = arith.negf %96 : vector<2x96xf32>
    %98 = math.exp %97 : vector<2x96xf32>
    %cst_34 = arith.constant 1.000000e+00 : f32
    %99 = vector.broadcast %cst_34 : f32 to vector<2x96xf32>
    %100 = arith.addf %99, %98 : vector<2x96xf32>
    %101 = arith.divf %99, %100 : vector<2x96xf32>
    %102 = vector.extract_strided_slice %101 {offsets = [0, 0], sizes = [2, 24], strides = [1, 1]} : vector<2x96xf32> to vector<2x24xf32>
    %103 = vector.extract_strided_slice %101 {offsets = [0, 24], sizes = [2, 24], strides = [1, 1]} : vector<2x96xf32> to vector<2x24xf32>
    %104 = vector.extract_strided_slice %101 {offsets = [0, 48], sizes = [2, 24], strides = [1, 1]} : vector<2x96xf32> to vector<2x24xf32>
    %cst_35 = arith.constant 2.000000e+00 : f32
    %105 = vector.broadcast %cst_35 : f32 to vector<2x24xf32>
    %106 = arith.mulf %105, %104 : vector<2x24xf32>
    %cst_36 = arith.constant 1.000000e+00 : f32
    %107 = vector.broadcast %cst_36 : f32 to vector<2x24xf32>
    %108 = arith.subf %106, %107 : vector<2x24xf32>
    %109 = vector.extract_strided_slice %101 {offsets = [0, 72], sizes = [2, 24], strides = [1, 1]} : vector<2x96xf32> to vector<2x24xf32>
    %110 = arith.mulf %103, %91 : vector<2x24xf32>
    %111 = arith.mulf %102, %108 : vector<2x24xf32>
    %112 = arith.addf %110, %111 : vector<2x24xf32>
    %113 = math.tanh %112 : vector<2x24xf32>
    %114 = arith.mulf %109, %113 : vector<2x24xf32>
    %c10 = arith.constant 10 : index
    %c0_37 = arith.constant 0 : index
    %115 = vector.load %arg13[%c10, %c0_37] : memref<16x96xf32, #tpu.memory_space<vmem>>, vector<2x96xf32>
    %cst_38 = arith.constant dense<0.000000e+00> : vector<2x96xf32>
    %116 = tpu.matmul %114, %7, %cst_38 {dimension_numbers = #tpu.dot_dimension_numbers<[1], [0], [0], [1], [0, 0, 1, 1], [], []>} : vector<2x24xf32>, vector<24x96xf32>, vector<2x96xf32> -> vector<2x96xf32>
    %117 = arith.addf %115, %116 : vector<2x96xf32>
    %118 = arith.negf %117 : vector<2x96xf32>
    %119 = math.exp %118 : vector<2x96xf32>
    %cst_39 = arith.constant 1.000000e+00 : f32
    %120 = vector.broadcast %cst_39 : f32 to vector<2x96xf32>
    %121 = arith.addf %120, %119 : vector<2x96xf32>
    %122 = arith.divf %120, %121 : vector<2x96xf32>
    %123 = vector.extract_strided_slice %122 {offsets = [0, 0], sizes = [2, 24], strides = [1, 1]} : vector<2x96xf32> to vector<2x24xf32>
    %124 = vector.extract_strided_slice %122 {offsets = [0, 24], sizes = [2, 24], strides = [1, 1]} : vector<2x96xf32> to vector<2x24xf32>
    %125 = vector.extract_strided_slice %122 {offsets = [0, 48], sizes = [2, 24], strides = [1, 1]} : vector<2x96xf32> to vector<2x24xf32>
    %cst_40 = arith.constant 2.000000e+00 : f32
    %126 = vector.broadcast %cst_40 : f32 to vector<2x24xf32>
    %127 = arith.mulf %126, %125 : vector<2x24xf32>
    %cst_41 = arith.constant 1.000000e+00 : f32
    %128 = vector.broadcast %cst_41 : f32 to vector<2x24xf32>
    %129 = arith.subf %127, %128 : vector<2x24xf32>
    %130 = vector.extract_strided_slice %122 {offsets = [0, 72], sizes = [2, 24], strides = [1, 1]} : vector<2x96xf32> to vector<2x24xf32>
    %131 = arith.mulf %124, %112 : vector<2x24xf32>
    %132 = arith.mulf %123, %129 : vector<2x24xf32>
    %133 = arith.addf %131, %132 : vector<2x24xf32>
    %134 = math.tanh %133 : vector<2x24xf32>
    %135 = arith.mulf %130, %134 : vector<2x24xf32>
    %c12 = arith.constant 12 : index
    %c0_42 = arith.constant 0 : index
    %136 = vector.load %arg13[%c12, %c0_42] : memref<16x96xf32, #tpu.memory_space<vmem>>, vector<2x96xf32>
    %cst_43 = arith.constant dense<0.000000e+00> : vector<2x96xf32>
    %137 = tpu.matmul %135, %7, %cst_43 {dimension_numbers = #tpu.dot_dimension_numbers<[1], [0], [0], [1], [0, 0, 1, 1], [], []>} : vector<2x24xf32>, vector<24x96xf32>, vector<2x96xf32> -> vector<2x96xf32>
    %138 = arith.addf %136, %137 : vector<2x96xf32>
    %139 = arith.negf %138 : vector<2x96xf32>
    %140 = math.exp %139 : vector<2x96xf32>
    %cst_44 = arith.constant 1.000000e+00 : f32
    %141 = vector.broadcast %cst_44 : f32 to vector<2x96xf32>
    %142 = arith.addf %141, %140 : vector<2x96xf32>
    %143 = arith.divf %141, %142 : vector<2x96xf32>
    %144 = vector.extract_strided_slice %143 {offsets = [0, 0], sizes = [2, 24], strides = [1, 1]} : vector<2x96xf32> to vector<2x24xf32>
    %145 = vector.extract_strided_slice %143 {offsets = [0, 24], sizes = [2, 24], strides = [1, 1]} : vector<2x96xf32> to vector<2x24xf32>
    %146 = vector.extract_strided_slice %143 {offsets = [0, 48], sizes = [2, 24], strides = [1, 1]} : vector<2x96xf32> to vector<2x24xf32>
    %cst_45 = arith.constant 2.000000e+00 : f32
    %147 = vector.broadcast %cst_45 : f32 to vector<2x24xf32>
    %148 = arith.mulf %147, %146 : vector<2x24xf32>
    %cst_46 = arith.constant 1.000000e+00 : f32
    %149 = vector.broadcast %cst_46 : f32 to vector<2x24xf32>
    %150 = arith.subf %148, %149 : vector<2x24xf32>
    %151 = vector.extract_strided_slice %143 {offsets = [0, 72], sizes = [2, 24], strides = [1, 1]} : vector<2x96xf32> to vector<2x24xf32>
    %152 = arith.mulf %145, %133 : vector<2x24xf32>
    %153 = arith.mulf %144, %150 : vector<2x24xf32>
    %154 = arith.addf %152, %153 : vector<2x24xf32>
    %155 = math.tanh %154 : vector<2x24xf32>
    %156 = arith.mulf %151, %155 : vector<2x24xf32>
    %c14 = arith.constant 14 : index
    %c0_47 = arith.constant 0 : index
    %157 = vector.load %arg13[%c14, %c0_47] : memref<16x96xf32, #tpu.memory_space<vmem>>, vector<2x96xf32>
    %cst_48 = arith.constant dense<0.000000e+00> : vector<2x96xf32>
    %158 = tpu.matmul %156, %7, %cst_48 {dimension_numbers = #tpu.dot_dimension_numbers<[1], [0], [0], [1], [0, 0, 1, 1], [], []>} : vector<2x24xf32>, vector<24x96xf32>, vector<2x96xf32> -> vector<2x96xf32>
    %159 = arith.addf %157, %158 : vector<2x96xf32>
    %160 = arith.negf %159 : vector<2x96xf32>
    %161 = math.exp %160 : vector<2x96xf32>
    %cst_49 = arith.constant 1.000000e+00 : f32
    %162 = vector.broadcast %cst_49 : f32 to vector<2x96xf32>
    %163 = arith.addf %162, %161 : vector<2x96xf32>
    %164 = arith.divf %162, %163 : vector<2x96xf32>
    %165 = vector.extract_strided_slice %164 {offsets = [0, 0], sizes = [2, 24], strides = [1, 1]} : vector<2x96xf32> to vector<2x24xf32>
    %166 = vector.extract_strided_slice %164 {offsets = [0, 24], sizes = [2, 24], strides = [1, 1]} : vector<2x96xf32> to vector<2x24xf32>
    %167 = vector.extract_strided_slice %164 {offsets = [0, 48], sizes = [2, 24], strides = [1, 1]} : vector<2x96xf32> to vector<2x24xf32>
    %cst_50 = arith.constant 2.000000e+00 : f32
    %168 = vector.broadcast %cst_50 : f32 to vector<2x24xf32>
    %169 = arith.mulf %168, %167 : vector<2x24xf32>
    %cst_51 = arith.constant 1.000000e+00 : f32
    %170 = vector.broadcast %cst_51 : f32 to vector<2x24xf32>
    %171 = arith.subf %169, %170 : vector<2x24xf32>
    %172 = vector.extract_strided_slice %164 {offsets = [0, 72], sizes = [2, 24], strides = [1, 1]} : vector<2x96xf32> to vector<2x24xf32>
    %173 = arith.mulf %166, %154 : vector<2x24xf32>
    %174 = arith.mulf %165, %171 : vector<2x24xf32>
    %175 = arith.addf %173, %174 : vector<2x24xf32>
    %176 = math.tanh %175 : vector<2x24xf32>
    %177 = arith.mulf %172, %176 : vector<2x24xf32>
    %c0_52 = arith.constant 0 : index
    %c0_53 = arith.constant 0 : index
    %178 = vector.load %arg4[%c0_52, %c0_53] : memref<24x24xf32, #tpu.memory_space<vmem>>, vector<24x24xf32>
    %cst_54 = arith.constant dense<0.000000e+00> : vector<2x24xf32>
    %179 = tpu.matmul %177, %178, %cst_54 {dimension_numbers = #tpu.dot_dimension_numbers<[1], [0], [0], [1], [0, 0, 1, 1], [], []>} : vector<2x24xf32>, vector<24x24xf32>, vector<2x24xf32> -> vector<2x24xf32>
    %c0_55 = arith.constant 0 : index
    %c0_56 = arith.constant 0 : index
    %180 = vector.load %arg5[%c0_55, %c0_56] : memref<1x24xf32, #tpu.memory_space<vmem>>, vector<1x24xf32>
    %181 = vector.broadcast %180 : vector<1x24xf32> to vector<2x24xf32>
    %182 = arith.addf %179, %181 : vector<2x24xf32>
    %c0_57 = arith.constant 0 : index
    %c0_58 = arith.constant 0 : index
    %183 = vector.load %arg6[%c0_57, %c0_58] : memref<24x24xf32, #tpu.memory_space<vmem>>, vector<24x24xf32>
    %cst_59 = arith.constant dense<0.000000e+00> : vector<2x24xf32>
    %184 = tpu.matmul %182, %183, %cst_59 {dimension_numbers = #tpu.dot_dimension_numbers<[1], [0], [0], [1], [0, 0, 1, 1], [], []>} : vector<2x24xf32>, vector<24x24xf32>, vector<2x24xf32> -> vector<2x24xf32>
    %c0_60 = arith.constant 0 : index
    %c0_61 = arith.constant 0 : index
    %185 = vector.load %arg7[%c0_60, %c0_61] : memref<1x24xf32, #tpu.memory_space<vmem>>, vector<1x24xf32>
    %186 = vector.broadcast %185 : vector<1x24xf32> to vector<2x24xf32>
    %187 = arith.addf %184, %186 : vector<2x24xf32>
    %cst_62 = arith.constant 0.000000e+00 : f32
    %188 = vector.broadcast %cst_62 : f32 to vector<2x24xf32>
    %189 = arith.maximumf %187, %188 : vector<2x24xf32>
    %c0_63 = arith.constant 0 : index
    %c0_64 = arith.constant 0 : index
    %190 = vector.load %arg8[%c0_63, %c0_64] : memref<24x24xf32, #tpu.memory_space<vmem>>, vector<24x24xf32>
    %cst_65 = arith.constant dense<0.000000e+00> : vector<2x24xf32>
    %191 = tpu.matmul %189, %190, %cst_65 {dimension_numbers = #tpu.dot_dimension_numbers<[1], [0], [0], [1], [0, 0, 1, 1], [], []>} : vector<2x24xf32>, vector<24x24xf32>, vector<2x24xf32> -> vector<2x24xf32>
    %c0_66 = arith.constant 0 : index
    %c0_67 = arith.constant 0 : index
    %192 = vector.load %arg9[%c0_66, %c0_67] : memref<1x24xf32, #tpu.memory_space<vmem>>, vector<1x24xf32>
    %193 = vector.broadcast %192 : vector<1x24xf32> to vector<2x24xf32>
    %194 = arith.addf %191, %193 : vector<2x24xf32>
    %cst_68 = arith.constant 0.000000e+00 : f32
    %195 = vector.broadcast %cst_68 : f32 to vector<2x24xf32>
    %196 = arith.maximumf %194, %195 : vector<2x24xf32>
    %c0_69 = arith.constant 0 : index
    %c0_70 = arith.constant 0 : index
    %197 = vector.load %arg10[%c0_69, %c0_70] : memref<24x1xf32, #tpu.memory_space<vmem>>, vector<24x1xf32>
    %cst_71 = arith.constant dense<0.000000e+00> : vector<2x1xf32>
    %198 = tpu.matmul %196, %197, %cst_71 {dimension_numbers = #tpu.dot_dimension_numbers<[1], [0], [0], [1], [0, 0, 1, 1], [], []>} : vector<2x24xf32>, vector<24x1xf32>, vector<2x1xf32> -> vector<2x1xf32>
    %c0_72 = arith.constant 0 : index
    %c0_73 = arith.constant 0 : index
    %199 = vector.load %arg11[%c0_72, %c0_73] : memref<1x1xf32, #tpu.memory_space<vmem>>, vector<1x1xf32>
    %200 = vector.broadcast %199 : vector<1x1xf32> to vector<2x1xf32>
    %201 = arith.addf %198, %200 : vector<2x1xf32>
    %c0_74 = arith.constant 0 : index
    %c0_75 = arith.constant 0 : index
    %202 = vector.load %arg12[%c0_74, %c0_75] : memref<2x1xf32, #tpu.memory_space<vmem>>, vector<2x1xf32>
    tpu.vector_store %arg12[%c0_74, %c0_75], %201 {strides = array<i32>} : memref<2x1xf32, #tpu.memory_space<vmem>>, vector<2x1xf32>,
    return
  }
}

</mosaic_0001>

<llo_original>
// kernel: md_forward.1
$region0: #{md_forward.1}
  #allocation0 [shape = 'u32[]', space=smem, size = 0x4, offset = 0x4, fixed_abs, tag = 'smem constant byte address 0x4 - core index']
  #allocation1 [shape = 'u32[72,128]{1,0:T(1,128)}', space=vmem, size = 0x9000, scoped, tag = 'internal scratch']
  #allocation2 [shape = 'f32[16,96]{1,0:T(8,128)}', space=vmem, size = 0x2000, scoped, tag = 'scratch operand']
  #allocation3 [shape = 'f32[1,1]{1,0:T(1,128)S(1)}', space=vmem, size = 0x200, scoped, tag = 'scoped memory for md_forward.1']
  %s0 = inlined_call_operand.vmem [shape: f32[16,16], index: 0, kind: input, shape index: {}]
  %s1 = inlined_call_operand.vmem [shape: f32[16,96], index: 1, kind: input, shape index: {}]
  %s2 = inlined_call_operand.vmem [shape: f32[24,96], index: 2, kind: input, shape index: {}]
  %s3 = inlined_call_operand.vmem [shape: f32[1,96], index: 3, kind: input, shape index: {}]
  %s4 = inlined_call_operand.vmem [shape: f32[24,24], index: 4, kind: input, shape index: {}]
  %s5 = inlined_call_operand.vmem [shape: f32[1,24], index: 5, kind: input, shape index: {}]
  %s6 = inlined_call_operand.vmem [shape: f32[24,24], index: 6, kind: input, shape index: {}]
  %s7 = inlined_call_operand.vmem [shape: f32[1,24], index: 7, kind: input, shape index: {}]
  %s8 = inlined_call_operand.hbm [shape: f32[24,24], index: 8, kind: input, shape index: {}]
  %s9 = inlined_call_operand.vmem [shape: f32[1,24], index: 9, kind: input, shape index: {}]
  %s10 = inlined_call_operand.vmem [shape: f32[24,1], index: 10, kind: input, shape index: {}]
  %s11 = inlined_call_operand.<no memory space> [shape: f32[1,1], index: 11, kind: input, shape index: {}]
  %s12 = inlined_call_operand.vmem [shape: f32[2,1], index: 12, kind: output, shape index: {}]
  %s13 = sld [smem:[#allocation0]]
  $region62: #{md_forward.1} parent=0
    _
  %s15 = ssub.s32 1, %s13
  %s16 = scalar_select 0, %s15, %s13
  %v17 = vstv %s11
  %18 = vst [vmem:[#allocation3] sm:$0x1] %v17
  $region1: #{md_forward.1} parent=0
    #allocation4 [shape = 'u8[12288]{0}', space=vmem, size = 0x3000, scoped, tag = 'input window, operand 8, single buffered']
    #allocation5 [shape = 's32[1]{0}', space=sflag, size = 0x4, scoped, tag = 'scoped memory for md_forward.1']
    %19 = vsyncpa [#allocation5], 0
    // Predicated region
    $region2: #{md_forward.1} parent=1 // pred_check
      _
    $region3: #{md_forward.1} parent=1 // pred_check_branch
      %21 = sbr.rel (0) target = $region5
    $region4: #{md_forward.1} parent=1 // pred_region
      _
    $region5: #{md_forward.1} parent=1 // pred_fallthru
      _
    // Predicated region
    $region6: #{md_forward.1} parent=1 // pred_check
      _
    $region7: #{md_forward.1} parent=1 // pred_check_branch
      %23 = sbr.rel (0) target = $region9
    $region8: #{md_forward.1} parent=1 // pred_region
      _
    $region9: #{md_forward.1} parent=1 // pred_fallthru
      _
    // Predicated region
    $region10: #{md_forward.1} parent=1 // pred_check
      _
    $region11: #{md_forward.1} parent=1 // pred_check_branch
      %25 = sbr.rel (0) target = $region13
    $region12: #{md_forward.1} parent=1 // pred_region
      _
    $region13: #{md_forward.1} parent=1 // pred_fallthru
      _
    // Predicated region
    $region14: #{md_forward.1} parent=1 // pred_check
      _
    $region15: #{md_forward.1} parent=1 // pred_check_branch
      %27 = sbr.rel (0) target = $region17
    $region16: #{md_forward.1} parent=1 // pred_region
      _
    $region17: #{md_forward.1} parent=1 // pred_fallthru
      _
    // Predicated region
    $region18: #{md_forward.1} parent=1 // pred_check
      _
    $region19: #{md_forward.1} parent=1 // pred_check_branch
      %29 = sbr.rel (0) target = $region21
    $region20: #{md_forward.1} parent=1 // pred_region
      _
    $region21: #{md_forward.1} parent=1 // pred_fallthru
      _
    // Predicated region
    $region22: #{md_forward.1} parent=1 // pred_check
      _
    $region23: #{md_forward.1} parent=1 // pred_check_branch
      %31 = sbr.rel (0) target = $region25
    $region24: #{md_forward.1} parent=1 // pred_region
      _
    $region25: #{md_forward.1} parent=1 // pred_fallthru
      _
    // Predicated region
    $region26: #{md_forward.1} parent=1 // pred_check
      _
    $region27: #{md_forward.1} parent=1 // pred_check_branch
      %33 = sbr.rel (0) target = $region29
    $region28: #{md_forward.1} parent=1 // pred_region
      _
    $region29: #{md_forward.1} parent=1 // pred_fallthru
      _
    // Predicated region
    $region30: #{md_forward.1} parent=1 // pred_check
      _
    $region31: #{md_forward.1} parent=1 // pred_check_branch
      %35 = sbr.rel (0) target = $region33
    $region32: #{md_forward.1} parent=1 // pred_region
      _
    $region33: #{md_forward.1} parent=1 // pred_fallthru
      _
    // Predicated region
    $region34: #{md_forward.1} parent=1 // pred_check
      _
    $region35: #{md_forward.1} parent=1 // pred_check_branch
      %37 = sbr.rel (0) target = $region37
    $region36: #{md_forward.1} parent=1 // pred_region
      %39 = vsyncadd [#allocation5], 0
      %s40 = sshll.u32 %s8, 4
      %s41 = int_to_ptr.hbm [resolvable:$true] %s40
      %s42 = sshll.u32 [#allocation4], 4
      %s43 = int_to_ptr.vmem [resolvable:$true] %s42
      %48 = dma.hbm_to_vmem [thread:$0]  %s41, 384, %s43, [#allocation5], 128, 128, 8
    $region37: #{md_forward.1} parent=1 // pred_fallthru
      _
    // Predicated region
    $region38: #{md_forward.1} parent=1 // pred_check
      _
    $region39: #{md_forward.1} parent=1 // pred_check_branch
      %50 = sbr.rel (0) target = $region41
    $region40: #{md_forward.1} parent=1 // pred_region
      _
    $region41: #{md_forward.1} parent=1 // pred_fallthru
      _
    // Predicated region
    $region42: #{md_forward.1} parent=1 // pred_check
      _
    $region43: #{md_forward.1} parent=1 // pred_check_branch
      %52 = sbr.rel (0) target = $region45
    $region44: #{md_forward.1} parent=1 // pred_region
      _
    $region45: #{md_forward.1} parent=1 // pred_fallthru
      _
    // Predicated region
    $region46: #{md_forward.1} parent=1 // pred_check
      _
    $region47: #{md_forward.1} parent=1 // pred_check_branch
      %54 = sbr.rel (0) target = $region49
    $region48: #{md_forward.1} parent=1 // pred_region
      _
    $region49: #{md_forward.1} parent=1 // pred_fallthru
      _
    // Predicated region
    $region50: #{md_forward.1} parent=1 // pred_check
      _
    $region51: #{md_forward.1} parent=1 // pred_check_branch
      %56 = sbr.rel (0) target = $region53
    $region52: #{md_forward.1} parent=1 // pred_region
      %58 = dma.done [#allocation5], 384
    $region53: #{md_forward.1} parent=1 // pred_fallthru
      _
    %v59 = vld [vmem:[%s0] sm:$0xff]
    %v60 = vld [vmem:[%s0 + $0x8] sm:$0xff]
    %v61 = vld [vmem:[%s1] sm:$0xff]
    %v62 = vld [vmem:[%s1 + $0x8] sm:$0xff]
    %v63 = vld [vmem:[%s3] sm:$0x1]
    %v65 = vperm.slane %v63, 0
    %vm67 = vcmask 130048
    %v69 = vsel %vm67, %v59, 0
    %v72 = vsel %vm67, %v60, 0
    %74 = vmatpush.msra.mxu0 0.0
    %75 = vmatpush.msra.mxu0 0.0
    %76 = vmatpush.msra.mxu0 0.0
    %77 = vmatpush.msra.mxu0 0.0
    %78 = vmatpush.msra.mxu0 0.0
    %79 = vmatpush.msra.mxu0 0.0
    %80 = vmatpush.msra.mxu0 0.0
    %81 = vmatpush.msra.mxu0 0.0
    %82 = vmatpush.msra.mxu0 0.0
    %83 = vmatpush.msra.mxu0 0.0
    %84 = vmatpush.msra.mxu0 0.0
    %85 = vmatpush.msra.mxu0 0.0
    %86 = vmatpush.msra.mxu0 0.0
    %87 = vmatpush.msra.mxu0 0.0
    %88 = vmatpush.msra.mxu0 %v62
    %89 = vmatpush.msra.mxu0 %v61
    %90 = vmatmul.f32.gmra.mxu0 %v69
    %v91 = vpop.f32.mrf.mxu0
    %v92 = vadd.f32 %v65, %v91
    %93 = vmatmul.f32.gmra.mxu0 %v72
    %v94 = vpop.f32.mrf.mxu0
    %v95 = vadd.f32 %v65, %v94
    %96 = vdwg.mxu0
    %vm97 = vcmask 785408
    %98 = vst.msk [vmem:[#allocation2] sm:$0xff] %vm97, %v92
    %99 = vst.msk [vmem:[#allocation2 + $0x8] sm:$0xff] %vm97, %v95
    %v100 = vld [vmem:[%s2] sm:$0xff]
    %v101 = vld [vmem:[%s2 + $0x8] sm:$0xff]
    %v102 = vld [vmem:[%s2 + $0x10] sm:$0xff]
    %v103 = vld [vmem:[#allocation2] sm:$0x3]
    %vm104 = vcmask 195584
    %v106 = vsel %vm104, 0.0, 0
    %108 = vmatpush.msra.mxu0 0.0
    %109 = vmatpush.msra.mxu0 0.0
    %110 = vmatpush.msra.mxu0 0.0
    %111 = vmatpush.msra.mxu0 0.0
    %112 = vmatpush.msra.mxu0 0.0
    %113 = vmatpush.msra.mxu0 0.0
    %114 = vmatpush.msra.mxu0 0.0
    %115 = vmatpush.msra.mxu0 0.0
    %116 = vmatpush.msra.mxu0 0.0
    %117 = vmatpush.msra.mxu0 0.0
    %118 = vmatpush.msra.mxu0 0.0
    %119 = vmatpush.msra.mxu0 0.0
    %120 = vmatpush.msra.mxu0 0.0
    %121 = vmatpush.msra.mxu0 %v102
    %122 = vmatpush.msra.mxu0 %v101
    %123 = vmatpush.msra.mxu0 %v100
    %124 = vmatmul.f32.gmra.mxu0 %v106
    %v125 = vpop.f32.mrf.mxu0
    %v126 = vadd.f32 0.0, %v125
    %127 = vdwg.mxu0
    %v128 = vadd.f32 %v103, %v126
    %v129 = vxor.u32 %v128, 2147483648
    %v130 = vmul.f32 %v129, 1.442695
    %v131 = vpow.pop %v130
    %v132 = vadd.f32 %v131, 1.0
    %v133 = vrcp.pop %v132
    %v134 = vmul.f32 %v132, %v133
    %v135 = vsub.f32 1.0, %v134
    %v136 = vmul.f32 %v133, %v135
    %v137 = vadd.f32 %v133, %v136
    %vm138 = vweird.f32 %v132
    %vm139 = vweird.f32 %v133
    %vm140 = vmor %vm138, %vm139
    %v141 = vsel %vm140, %v133, %v137
    %v142 = vand.u32 2147483647, %v132
    %vm143 = vcmp.eq.f32.partialorder %v142, 8.507059e+37
    %v144 = vand.u32 %v132, 2147483648
    %v145 = vor.u32 1.1754944e-38, %v144
    %v146 = vsel %vm143, %v145, %v141
    %v147 = vmul.f32 1.0, %v146
    %v148 = vmul.f32 %v147, 2.0
    %v149 = vsub.f32 %v148, 1.0
    %v150 = vmul.f32 %v147, 0.0
    %152 = vrot.lane.b32.xlu0 %v149, 80
    %v153 = vpop.permute.xlu0 %152
    %v155 = vmul.f32 %v147, %v153
    %157 = vrot.lane.b32.xlu0 %v155, 24
    %v158 = vpop.permute.xlu0 %157
    %v160 = vadd.f32 %v150, %v158
    %v161 = vtanh.pop %v160
    %163 = vrot.lane.b32.xlu0 %v161, 48
    %v164 = vpop.permute.xlu0 %163
    %v166 = vmul.f32 %v147, %v164
    %v167 = vld [vmem:[#allocation2 + $0x2] sm:$0x3]
    %169 = vrot.lane.b32.xlu0 %v166, 56
    %v170 = vpop.permute.xlu0 %169
    %v171 = vsel %vm104, %v170, 0
    %173 = vmatpush.msra.mxu0 0.0
    %174 = vmatpush.msra.mxu0 0.0
    %175 = vmatpush.msra.mxu0 0.0
    %176 = vmatpush.msra.mxu0 0.0
    %177 = vmatpush.msra.mxu0 0.0
    %178 = vmatpush.msra.mxu0 0.0
    %179 = vmatpush.msra.mxu0 0.0
    %180 = vmatpush.msra.mxu0 0.0
    %181 = vmatpush.msra.mxu0 0.0
    %182 = vmatpush.msra.mxu0 0.0
    %183 = vmatpush.msra.mxu0 0.0
    %184 = vmatpush.msra.mxu0 0.0
    %185 = vmatpush.msra.mxu0 0.0
    %186 = vmatpush.msra.mxu0 %v102
    %187 = vmatpush.msra.mxu0 %v101
    %188 = vmatpush.msra.mxu0 %v100
    %189 = vmatmul.f32.gmra.mxu0 %v171
    %v190 = vpop.f32.mrf.mxu0
    %v191 = vadd.f32 0.0, %v190
    %192 = vdwg.mxu0
    %v193 = vadd.f32 %v167, %v191
    %v194 = vxor.u32 %v193, 2147483648
    %v195 = vmul.f32 %v194, 1.442695
    %v196 = vpow.pop %v195
    %v197 = vadd.f32 %v196, 1.0
    %v198 = vrcp.pop %v197
    %v199 = vmul.f32 %v197, %v198
    %v200 = vsub.f32 1.0, %v199
    %v201 = vmul.f32 %v198, %v200
    %v202 = vadd.f32 %v198, %v201
    %vm203 = vweird.f32 %v197
    %vm204 = vweird.f32 %v198
    %vm205 = vmor %vm203, %vm204
    %v206 = vsel %vm205, %v198, %v202
    %v207 = vand.u32 2147483647, %v197
    %vm208 = vcmp.eq.f32.partialorder %v207, 8.507059e+37
    %v209 = vand.u32 %v197, 2147483648
    %v210 = vor.u32 1.1754944e-38, %v209
    %v211 = vsel %vm208, %v210, %v206
    %v212 = vmul.f32 1.0, %v211
    %v213 = vmul.f32 %v212, 2.0
    %v214 = vsub.f32 %v213, 1.0
    %v215 = vmul.f32 %v212, %v160
    %217 = vrot.lane.b32.xlu0 %v214, 80
    %v218 = vpop.permute.xlu0 %217
    %v220 = vmul.f32 %v212, %v218
    %222 = vrot.lane.b32.xlu0 %v220, 24
    %v223 = vpop.permute.xlu0 %222
    %v225 = vadd.f32 %v215, %v223
    %v226 = vtanh.pop %v225
    %228 = vrot.lane.b32.xlu0 %v226, 48
    %v229 = vpop.permute.xlu0 %228
    %v231 = vmul.f32 %v212, %v229
    %v232 = vld [vmem:[#allocation2 + $0x4] sm:$0x3]
    %234 = vrot.lane.b32.xlu0 %v231, 56
    %v235 = vpop.permute.xlu0 %234
    %v236 = vsel %vm104, %v235, 0
    %238 = vmatpush.msra.mxu0 0.0
    %239 = vmatpush.msra.mxu0 0.0
    %240 = vmatpush.msra.mxu0 0.0
    %241 = vmatpush.msra.mxu0 0.0
    %242 = vmatpush.msra.mxu0 0.0
    %243 = vmatpush.msra.mxu0 0.0
    %244 = vmatpush.msra.mxu0 0.0
    %245 = vmatpush.msra.mxu0 0.0
    %246 = vmatpush.msra.mxu0 0.0
    %247 = vmatpush.msra.mxu0 0.0
    %248 = vmatpush.msra.mxu0 0.0
    %249 = vmatpush.msra.mxu0 0.0
    %250 = vmatpush.msra.mxu0 0.0
    %251 = vmatpush.msra.mxu0 %v102
    %252 = vmatpush.msra.mxu0 %v101
    %253 = vmatpush.msra.mxu0 %v100
    %254 = vmatmul.f32.gmra.mxu0 %v236
    %v255 = vpop.f32.mrf.mxu0
    %v256 = vadd.f32 0.0, %v255
    %257 = vdwg.mxu0
    %v258 = vadd.f32 %v232, %v256
    %v259 = vxor.u32 %v258, 2147483648
    %v260 = vmul.f32 %v259, 1.442695
    %v261 = vpow.pop %v260
    %v262 = vadd.f32 %v261, 1.0
    %v263 = vrcp.pop %v262
    %v264 = vmul.f32 %v262, %v263
    %v265 = vsub.f32 1.0, %v264
    %v266 = vmul.f32 %v263, %v265
    %v267 = vadd.f32 %v263, %v266
    %vm268 = vweird.f32 %v262
    %vm269 = vweird.f32 %v263
    %vm270 = vmor %vm268, %vm269
    %v271 = vsel %vm270, %v263, %v267
    %v272 = vand.u32 2147483647, %v262
    %vm273 = vcmp.eq.f32.partialorder %v272, 8.507059e+37
    %v274 = vand.u32 %v262, 2147483648
    %v275 = vor.u32 1.1754944e-38, %v274
    %v276 = vsel %vm273, %v275, %v271
    %v277 = vmul.f32 1.0, %v276
    %v278 = vmul.f32 %v277, 2.0
    %v279 = vsub.f32 %v278, 1.0
    %v280 = vmul.f32 %v277, %v225
    %282 = vrot.lane.b32.xlu0 %v279, 80
    %v283 = vpop.permute.xlu0 %282
    %v285 = vmul.f32 %v277, %v283
    %287 = vrot.lane.b32.xlu0 %v285, 24
    %v288 = vpop.permute.xlu0 %287
    %v290 = vadd.f32 %v280, %v288
    %v291 = vtanh.pop %v290
    %293 = vrot.lane.b32.xlu0 %v291, 48
    %v294 = vpop.permute.xlu0 %293
    %v296 = vmul.f32 %v277, %v294
    %v297 = vld [vmem:[#allocation2 + $0x6] sm:$0x3]
    %299 = vrot.lane.b32.xlu0 %v296, 56
    %v300 = vpop.permute.xlu0 %299
    %v301 = vsel %vm104, %v300, 0
    %303 = vmatpush.msra.mxu0 0.0
    %304 = vmatpush.msra.mxu0 0.0
    %305 = vmatpush.msra.mxu0 0.0
    %306 = vmatpush.msra.mxu0 0.0
    %307 = vmatpush.msra.mxu0 0.0
    %308 = vmatpush.msra.mxu0 0.0
    %309 = vmatpush.msra.mxu0 0.0
    %310 = vmatpush.msra.mxu0 0.0
    %311 = vmatpush.msra.mxu0 0.0
    %312 = vmatpush.msra.mxu0 0.0
    %313 = vmatpush.msra.mxu0 0.0
    %314 = vmatpush.msra.mxu0 0.0
    %315 = vmatpush.msra.mxu0 0.0
    %316 = vmatpush.msra.mxu0 %v102
    %317 = vmatpush.msra.mxu0 %v101
    %318 = vmatpush.msra.mxu0 %v100
    %319 = vmatmul.f32.gmra.mxu0 %v301
    %v320 = vpop.f32.mrf.mxu0
    %v321 = vadd.f32 0.0, %v320
    %322 = vdwg.mxu0
    %v323 = vadd.f32 %v297, %v321
    %v324 = vxor.u32 %v323, 2147483648
    %v325 = vmul.f32 %v324, 1.442695
    %v326 = vpow.pop %v325
    %v327 = vadd.f32 %v326, 1.0
    %v328 = vrcp.pop %v327
    %v329 = vmul.f32 %v327, %v328
    %v330 = vsub.f32 1.0, %v329
    %v331 = vmul.f32 %v328, %v330
    %v332 = vadd.f32 %v328, %v331
    %vm333 = vweird.f32 %v327
    %vm334 = vweird.f32 %v328
    %vm335 = vmor %vm333, %vm334
    %v336 = vsel %vm335, %v328, %v332
    %v337 = vand.u32 2147483647, %v327
    %vm338 = vcmp.eq.f32.partialorder %v337, 8.507059e+37
    %v339 = vand.u32 %v327, 2147483648
    %v340 = vor.u32 1.1754944e-38, %v339
    %v341 = vsel %vm338, %v340, %v336
    %v342 = vmul.f32 1.0, %v341
    %v343 = vmul.f32 %v342, 2.0
    %v344 = vsub.f32 %v343, 1.0
    %v345 = vmul.f32 %v342, %v290
    %347 = vrot.lane.b32.xlu0 %v344, 80
    %v348 = vpop.permute.xlu0 %347
    %v350 = vmul.f32 %v342, %v348
    %352 = vrot.lane.b32.xlu0 %v350, 24
    %v353 = vpop.permute.xlu0 %352
    %v355 = vadd.f32 %v345, %v353
    %v356 = vtanh.pop %v355
    %358 = vrot.lane.b32.xlu0 %v356, 48
    %v359 = vpop.permute.xlu0 %358
    %v361 = vmul.f32 %v342, %v359
    %v362 = vld [vmem:[#allocation2 + $0x8] sm:$0x3]
    %364 = vrot.lane.b32.xlu0 %v361, 56
    %v365 = vpop.permute.xlu0 %364
    %v366 = vsel %vm104, %v365, 0
    %368 = vmatpush.msra.mxu0 0.0
    %369 = vmatpush.msra.mxu0 0.0
    %370 = vmatpush.msra.mxu0 0.0
    %371 = vmatpush.msra.mxu0 0.0
    %372 = vmatpush.msra.mxu0 0.0
    %373 = vmatpush.msra.mxu0 0.0
    %374 = vmatpush.msra.mxu0 0.0
    %375 = vmatpush.msra.mxu0 0.0
    %376 = vmatpush.msra.mxu0 0.0
    %377 = vmatpush.msra.mxu0 0.0
    %378 = vmatpush.msra.mxu0 0.0
    %379 = vmatpush.msra.mxu0 0.0
    %380 = vmatpush.msra.mxu0 0.0
    %381 = vmatpush.msra.mxu0 %v102
    %382 = vmatpush.msra.mxu0 %v101
    %383 = vmatpush.msra.mxu0 %v100
    %384 = vmatmul.f32.gmra.mxu0 %v366
    %v385 = vpop.f32.mrf.mxu0
    %v386 = vadd.f32 0.0, %v385
    %387 = vdwg.mxu0
    %v388 = vadd.f32 %v362, %v386
    %v389 = vxor.u32 %v388, 2147483648
    %v390 = vmul.f32 %v389, 1.442695
    %v391 = vpow.pop %v390
    %v392 = vadd.f32 %v391, 1.0
    %v393 = vrcp.pop %v392
    %v394 = vmul.f32 %v392, %v393
    %v395 = vsub.f32 1.0, %v394
    %v396 = vmul.f32 %v393, %v395
    %v397 = vadd.f32 %v393, %v396
    %vm398 = vweird.f32 %v392
    %vm399 = vweird.f32 %v393
    %vm400 = vmor %vm398, %vm399
    %v401 = vsel %vm400, %v393, %v397
    %v402 = vand.u32 2147483647, %v392
    %vm403 = vcmp.eq.f32.partialorder %v402, 8.507059e+37
    %v404 = vand.u32 %v392, 2147483648
    %v405 = vor.u32 1.1754944e-38, %v404
    %v406 = vsel %vm403, %v405, %v401
    %v407 = vmul.f32 1.0, %v406
    %v408 = vmul.f32 %v407, 2.0
    %v409 = vsub.f32 %v408, 1.0
    %v410 = vmul.f32 %v407, %v355
    %412 = vrot.lane.b32.xlu0 %v409, 80
    %v413 = vpop.permute.xlu0 %412
    %v415 = vmul.f32 %v407, %v413
    %417 = vrot.lane.b32.xlu0 %v415, 24
    %v418 = vpop.permute.xlu0 %417
    %v420 = vadd.f32 %v410, %v418
    %v421 = vtanh.pop %v420
    %423 = vrot.lane.b32.xlu0 %v421, 48
    %v424 = vpop.permute.xlu0 %423
    %v426 = vmul.f32 %v407, %v424
    %v427 = vld [vmem:[#allocation2 + $0xa] sm:$0x3]
    %429 = vrot.lane.b32.xlu0 %v426, 56
    %v430 = vpop.permute.xlu0 %429
    %v431 = vsel %vm104, %v430, 0
    %433 = vmatpush.msra.mxu0 0.0
    %434 = vmatpush.msra.mxu0 0.0
    %435 = vmatpush.msra.mxu0 0.0
    %436 = vmatpush.msra.mxu0 0.0
    %437 = vmatpush.msra.mxu0 0.0
    %438 = vmatpush.msra.mxu0 0.0
    %439 = vmatpush.msra.mxu0 0.0
    %440 = vmatpush.msra.mxu0 0.0
    %441 = vmatpush.msra.mxu0 0.0
    %442 = vmatpush.msra.mxu0 0.0
    %443 = vmatpush.msra.mxu0 0.0
    %444 = vmatpush.msra.mxu0 0.0
    %445 = vmatpush.msra.mxu0 0.0
    %446 = vmatpush.msra.mxu0 %v102
    %447 = vmatpush.msra.mxu0 %v101
    %448 = vmatpush.msra.mxu0 %v100
    %449 = vmatmul.f32.gmra.mxu0 %v431
    %v450 = vpop.f32.mrf.mxu0
    %v451 = vadd.f32 0.0, %v450
    %452 = vdwg.mxu0
    %v453 = vadd.f32 %v427, %v451
    %v454 = vxor.u32 %v453, 2147483648
    %v455 = vmul.f32 %v454, 1.442695
    %v456 = vpow.pop %v455
    %v457 = vadd.f32 %v456, 1.0
    %v458 = vrcp.pop %v457
    %v459 = vmul.f32 %v457, %v458
    %v460 = vsub.f32 1.0, %v459
    %v461 = vmul.f32 %v458, %v460
    %v462 = vadd.f32 %v458, %v461
    %vm463 = vweird.f32 %v457
    %vm464 = vweird.f32 %v458
    %vm465 = vmor %vm463, %vm464
    %v466 = vsel %vm465, %v458, %v462
    %v467 = vand.u32 2147483647, %v457
    %vm468 = vcmp.eq.f32.partialorder %v467, 8.507059e+37
    %v469 = vand.u32 %v457, 2147483648
    %v470 = vor.u32 1.1754944e-38, %v469
    %v471 = vsel %vm468, %v470, %v466
    %v472 = vmul.f32 1.0, %v471
    %v473 = vmul.f32 %v472, 2.0
    %v474 = vsub.f32 %v473, 1.0
    %v475 = vmul.f32 %v472, %v420
    %477 = vrot.lane.b32.xlu0 %v474, 80
    %v478 = vpop.permute.xlu0 %477
    %v480 = vmul.f32 %v472, %v478
    %482 = vrot.lane.b32.xlu0 %v480, 24
    %v483 = vpop.permute.xlu0 %482
    %v485 = vadd.f32 %v475, %v483
    %v486 = vtanh.pop %v485
    %488 = vrot.lane.b32.xlu0 %v486, 48
    %v489 = vpop.permute.xlu0 %488
    %v491 = vmul.f32 %v472, %v489
    %v492 = vld [vmem:[#allocation2 + $0xc] sm:$0x3]
    %494 = vrot.lane.b32.xlu0 %v491, 56
    %v495 = vpop.permute.xlu0 %494
    %v496 = vsel %vm104, %v495, 0
    %498 = vmatpush.msra.mxu0 0.0
    %499 = vmatpush.msra.mxu0 0.0
    %500 = vmatpush.msra.mxu0 0.0
    %501 = vmatpush.msra.mxu0 0.0
    %502 = vmatpush.msra.mxu0 0.0
    %503 = vmatpush.msra.mxu0 0.0
    %504 = vmatpush.msra.mxu0 0.0
    %505 = vmatpush.msra.mxu0 0.0
    %506 = vmatpush.msra.mxu0 0.0
    %507 = vmatpush.msra.mxu0 0.0
    %508 = vmatpush.msra.mxu0 0.0
    %509 = vmatpush.msra.mxu0 0.0
    %510 = vmatpush.msra.mxu0 0.0
    %511 = vmatpush.msra.mxu0 %v102
    %512 = vmatpush.msra.mxu0 %v101
    %513 = vmatpush.msra.mxu0 %v100
    %514 = vmatmul.f32.gmra.mxu0 %v496
    %v515 = vpop.f32.mrf.mxu0
    %v516 = vadd.f32 0.0, %v515
    %517 = vdwg.mxu0
    %v518 = vadd.f32 %v492, %v516
    %v519 = vxor.u32 %v518, 2147483648
    %v520 = vmul.f32 %v519, 1.442695
    %v521 = vpow.pop %v520
    %v522 = vadd.f32 %v521, 1.0
    %v523 = vrcp.pop %v522
    %v524 = vmul.f32 %v522, %v523
    %v525 = vsub.f32 1.0, %v524
    %v526 = vmul.f32 %v523, %v525
    %v527 = vadd.f32 %v523, %v526
    %vm528 = vweird.f32 %v522
    %vm529 = vweird.f32 %v523
    %vm530 = vmor %vm528, %vm529
    %v531 = vsel %vm530, %v523, %v527
    %v532 = vand.u32 2147483647, %v522
    %vm533 = vcmp.eq.f32.partialorder %v532, 8.507059e+37
    %v534 = vand.u32 %v522, 2147483648
    %v535 = vor.u32 1.1754944e-38, %v534
    %v536 = vsel %vm533, %v535, %v531
    %v537 = vmul.f32 1.0, %v536
    %v538 = vmul.f32 %v537, 2.0
    %v539 = vsub.f32 %v538, 1.0
    %v540 = vmul.f32 %v537, %v485
    %542 = vrot.lane.b32.xlu0 %v539, 80
    %v543 = vpop.permute.xlu0 %542
    %v545 = vmul.f32 %v537, %v543
    %547 = vrot.lane.b32.xlu0 %v545, 24
    %v548 = vpop.permute.xlu0 %547
    %v550 = vadd.f32 %v540, %v548
    %v551 = vtanh.pop %v550
    %553 = vrot.lane.b32.xlu0 %v551, 48
    %v554 = vpop.permute.xlu0 %553
    %v556 = vmul.f32 %v537, %v554
    %v557 = vld [vmem:[#allocation2 + $0xe] sm:$0x3]
    %559 = vrot.lane.b32.xlu0 %v556, 56
    %v560 = vpop.permute.xlu0 %559
    %v561 = vsel %vm104, %v560, 0
    %563 = vmatpush.msra.mxu0 0.0
    %564 = vmatpush.msra.mxu0 0.0
    %565 = vmatpush.msra.mxu0 0.0
    %566 = vmatpush.msra.mxu0 0.0
    %567 = vmatpush.msra.mxu0 0.0
    %568 = vmatpush.msra.mxu0 0.0
    %569 = vmatpush.msra.mxu0 0.0
    %570 = vmatpush.msra.mxu0 0.0
    %571 = vmatpush.msra.mxu0 0.0
    %572 = vmatpush.msra.mxu0 0.0
    %573 = vmatpush.msra.mxu0 0.0
    %574 = vmatpush.msra.mxu0 0.0
    %575 = vmatpush.msra.mxu0 0.0
    %576 = vmatpush.msra.mxu0 %v102
    %577 = vmatpush.msra.mxu0 %v101
    %578 = vmatpush.msra.mxu0 %v100
    %579 = vmatmul.f32.gmra.mxu0 %v561
    %v580 = vpop.f32.mrf.mxu0
    %v581 = vadd.f32 0.0, %v580
    %582 = vdwg.mxu0
    %v583 = vadd.f32 %v557, %v581
    %v584 = vxor.u32 %v583, 2147483648
    %v585 = vmul.f32 %v584, 1.442695
    %v586 = vpow.pop %v585
    %v587 = vadd.f32 %v586, 1.0
    %v588 = vrcp.pop %v587
    %v589 = vmul.f32 %v587, %v588
    %v590 = vsub.f32 1.0, %v589
    %v591 = vmul.f32 %v588, %v590
    %v592 = vadd.f32 %v588, %v591
    %vm593 = vweird.f32 %v587
    %vm594 = vweird.f32 %v588
    %vm595 = vmor %vm593, %vm594
    %v596 = vsel %vm595, %v588, %v592
    %v597 = vand.u32 2147483647, %v587
    %vm598 = vcmp.eq.f32.partialorder %v597, 8.507059e+37
    %v599 = vand.u32 %v587, 2147483648
    %v600 = vor.u32 1.1754944e-38, %v599
    %v601 = vsel %vm598, %v600, %v596
    %v602 = vmul.f32 1.0, %v601
    %v603 = vmul.f32 %v602, 2.0
    %v604 = vsub.f32 %v603, 1.0
    %v605 = vmul.f32 %v602, %v550
    %607 = vrot.lane.b32.xlu0 %v604, 80
    %v608 = vpop.permute.xlu0 %607
    %v610 = vmul.f32 %v602, %v608
    %612 = vrot.lane.b32.xlu0 %v610, 24
    %v613 = vpop.permute.xlu0 %612
    %v615 = vadd.f32 %v605, %v613
    %v616 = vtanh.pop %v615
    %618 = vrot.lane.b32.xlu0 %v616, 48
    %v619 = vpop.permute.xlu0 %618
    %v621 = vmul.f32 %v602, %v619
    %v622 = vld [vmem:[%s4] sm:$0xff]
    %v623 = vld [vmem:[%s4 + $0x8] sm:$0xff]
    %v624 = vld [vmem:[%s4 + $0x10] sm:$0xff]
    %v625 = vld [vmem:[%s5] sm:$0x1]
    %v627 = vperm.slane %v625, 0
    %630 = vrot.lane.b32.xlu0 %v621, 56
    %v631 = vpop.permute.xlu0 %630
    %v632 = vsel %vm104, %v631, 0
    %634 = vmatpush.msra.mxu0 0.0
    %635 = vmatpush.msra.mxu0 0.0
    %636 = vmatpush.msra.mxu0 0.0
    %637 = vmatpush.msra.mxu0 0.0
    %638 = vmatpush.msra.mxu0 0.0
    %639 = vmatpush.msra.mxu0 0.0
    %640 = vmatpush.msra.mxu0 0.0
    %641 = vmatpush.msra.mxu0 0.0
    %642 = vmatpush.msra.mxu0 0.0
    %643 = vmatpush.msra.mxu0 0.0
    %644 = vmatpush.msra.mxu0 0.0
    %645 = vmatpush.msra.mxu0 0.0
    %646 = vmatpush.msra.mxu0 0.0
    %647 = vmatpush.msra.mxu0 %v624
    %648 = vmatpush.msra.mxu0 %v623
    %649 = vmatpush.msra.mxu0 %v622
    %650 = vmatmul.f32.gmra.mxu0 %v632
    %v651 = vpop.f32.mrf.mxu0
    %v652 = vadd.f32 %v627, %v651
    %653 = vdwg.mxu0
    %v654 = vld [vmem:[%s6] sm:$0xff]
    %v655 = vld [vmem:[%s6 + $0x8] sm:$0xff]
    %v656 = vld [vmem:[%s6 + $0x10] sm:$0xff]
    %v657 = vld [vmem:[%s7] sm:$0x1]
    %v659 = vperm.slane %v657, 0
    %v662 = vsel %vm104, %v652, 0
    %664 = vmatpush.msra.mxu0 0.0
    %665 = vmatpush.msra.mxu0 0.0
    %666 = vmatpush.msra.mxu0 0.0
    %667 = vmatpush.msra.mxu0 0.0
    %668 = vmatpush.msra.mxu0 0.0
    %669 = vmatpush.msra.mxu0 0.0
    %670 = vmatpush.msra.mxu0 0.0
    %671 = vmatpush.msra.mxu0 0.0
    %672 = vmatpush.msra.mxu0 0.0
    %673 = vmatpush.msra.mxu0 0.0
    %674 = vmatpush.msra.mxu0 0.0
    %675 = vmatpush.msra.mxu0 0.0
    %676 = vmatpush.msra.mxu0 0.0
    %677 = vmatpush.msra.mxu0 %v656
    %678 = vmatpush.msra.mxu0 %v655
    %679 = vmatpush.msra.mxu0 %v654
    %680 = vmatmul.f32.gmra.mxu0 %v662
    %v681 = vpop.f32.mrf.mxu0
    %v682 = vadd.f32 %v659, %v681
    %683 = vdwg.mxu0
    %v684 = vmax.f32 %v682, 0.0
    %v685 = vld [vmem:[#allocation4] sm:$0xff]
    %v686 = vld [vmem:[#allocation4 + $0x8] sm:$0xff]
    %v687 = vld [vmem:[#allocation4 + $0x10] sm:$0xff]
    %v688 = vld [vmem:[%s9] sm:$0x1]
    %v690 = vperm.slane %v688, 0
    %v693 = vsel %vm104, %v684, 0
    %695 = vmatpush.msra.mxu0 0.0
    %696 = vmatpush.msra.mxu0 0.0
    %697 = vmatpush.msra.mxu0 0.0
    %698 = vmatpush.msra.mxu0 0.0
    %699 = vmatpush.msra.mxu0 0.0
    %700 = vmatpush.msra.mxu0 0.0
    %701 = vmatpush.msra.mxu0 0.0
    %702 = vmatpush.msra.mxu0 0.0
    %703 = vmatpush.msra.mxu0 0.0
    %704 = vmatpush.msra.mxu0 0.0
    %705 = vmatpush.msra.mxu0 0.0
    %706 = vmatpush.msra.mxu0 0.0
    %707 = vmatpush.msra.mxu0 0.0
    %708 = vmatpush.msra.mxu0 %v687
    %709 = vmatpush.msra.mxu0 %v686
    %710 = vmatpush.msra.mxu0 %v685
    %711 = vmatmul.f32.gmra.mxu0 %v693
    %v712 = vpop.f32.mrf.mxu0
    %v713 = vadd.f32 %v690, %v712
    %714 = vdwg.mxu0
    %v715 = vmax.f32 %v713, 0.0
    %v716 = vld [vmem:[%s10] sm:$0xff]
    %v717 = vld [vmem:[%s10 + $0x8] sm:$0xff]
    %v718 = vld [vmem:[%s10 + $0x10] sm:$0xff]
    %v719 = vld [vmem:[#allocation3] sm:$0x1]
    %v721 = vperm.slane %v719, 0
    %v724 = vsel %vm104, %v715, 0
    %726 = vmatpush.msra.mxu0 0.0
    %727 = vmatpush.msra.mxu0 0.0
    %728 = vmatpush.msra.mxu0 0.0
    %729 = vmatpush.msra.mxu0 0.0
    %730 = vmatpush.msra.mxu0 0.0
    %731 = vmatpush.msra.mxu0 0.0
    %732 = vmatpush.msra.mxu0 0.0
    %733 = vmatpush.msra.mxu0 0.0
    %734 = vmatpush.msra.mxu0 0.0
    %735 = vmatpush.msra.mxu0 0.0
    %736 = vmatpush.msra.mxu0 0.0
    %737 = vmatpush.msra.mxu0 0.0
    %738 = vmatpush.msra.mxu0 0.0
    %739 = vmatpush.msra.mxu0 %v718
    %740 = vmatpush.msra.mxu0 %v717
    %741 = vmatpush.msra.mxu0 %v716
    %742 = vmatmul.f32.gmra.mxu0 %v724
    %v743 = vpop.f32.mrf.mxu0
    %v744 = vadd.f32 %v721, %v743
    %745 = vdwg.mxu0
    %vm746 = vcmask 1024
    %747 = vst.msk [vmem:[%s12] sm:$0x3] %vm746, %v744
    // Predicated region
    $region54: #{md_forward.1} parent=1 // pred_check
      _
    $region55: #{md_forward.1} parent=1 // pred_check_branch
      %749 = sbr.rel (0) target = $region57
    $region56: #{md_forward.1} parent=1 // pred_region
      _
    $region57: #{md_forward.1} parent=1 // pred_fallthru
      _
    // Predicated region
    $region58: #{md_forward.1} parent=1 // pred_check
      _
    $region59: #{md_forward.1} parent=1 // pred_check_branch
      %751 = sbr.rel (0) target = $region61
    $region60: #{md_forward.1} parent=1 // pred_region
      _
    $region61: #{md_forward.1} parent=1 // pred_fallthru
      _
    %752 = vsyncpa [#allocation5], 1

</llo_original>
